<compile_context>
chip_gen: v6e
topology: v6e:2x2x1
jax: 0.10.0
libtpu: 0.0.40
codegen_flags: <defaults>
</compile_context>

<pallas_src>
import numpy as np
import jax
import jax.numpy as jnp
from jax.experimental import pallas as pl
from jax.experimental.pallas import tpu as pltpu


def _round_up(x, m):
    return ((x + m - 1) // m) * m


def _pack_gates(w, H, Hp):
    """(in_dim, 3H) [r|z|n] -> (in_dim, 3*Hp) with each gate block zero-padded to Hp."""
    r, z, n = w[:, :H], w[:, H:2 * H], w[:, 2 * H:3 * H]
    pad = ((0, 0), (0, Hp - H))
    return jnp.concatenate([jnp.pad(r, pad), jnp.pad(z, pad), jnp.pad(n, pad)], axis=1)


def vqa_kernel(len0_ref,                      # SMEM (1,) int32 : lengths[0]
               emb0_ref, gather_w_ref, img_ref,
               w_ih_ref, w_hh_ref, b_rnn_ref,
               w_desc_ref, w_img_ref, b_fc_ref,
               out_ref,
               gi_ref, seq_ref):
    Hp3 = w_hh_ref.shape[1]
    Hp = Hp3 // 3

    # Hoisted input projection for sequence 0: one (T,E)x(E,3Hp) matmul, b_ih
    # folded in, staged to VMEM so the serial loop reads (1,3Hp) rows via pl.ds.
    gi_ref[...] = (jnp.dot(emb0_ref[...], w_ih_ref[...],
                           preferred_element_type=jnp.float32)
                   + b_rnn_ref[0:1, :])                                    # (T, 3Hp)

    # Rows >= len0 of the staging buffer must be exactly 0 (they feed the
    # one-hot gather); VMEM scratch is uninitialized, so zero it first.
    seq_ref[...] = jnp.zeros_like(seq_ref)

    w_hh = w_hh_ref[...]            # stationary (Hp, 3Hp) RHS of the recurrence
    b_hh = b_rnn_ref[1:2, :]        # (1, 3Hp)
    len0 = len0_ref[0]

    def step(t, h):
        gi = gi_ref[pl.ds(t, 1), :]                                        # (1, 3Hp)
        gh = jnp.dot(h, w_hh, preferred_element_type=jnp.float32) + b_hh   # (1, 3Hp)
        # Gate slices are lane-aligned (Hp is a multiple of 128) -> whole-vreg picks.
        r = jax.nn.sigmoid(gi[:, 0:Hp] + gh[:, 0:Hp])
        z = jax.nn.sigmoid(gi[:, Hp:2 * Hp] + gh[:, Hp:2 * Hp])
        n = jnp.tanh(gi[:, 2 * Hp:3 * Hp] + r * gh[:, 2 * Hp:3 * Hp])
        h = (1.0 - z) * n + z * h
        seq_ref[pl.ds(t, 1), :] = h          # stage h0_t for the post-loop gather
        return h

    # Dynamic trip count: steps beyond lengths[0] are discarded by the gather,
    # so they never enter the serial latency chain.
    # TODO(synk): if the bundle dump shows w_hh re-pushed into the MXU each step,
    # drive it explicitly (pltpu.matmul_push_rhs / matmul_acc_lhs / matmul_pop).
    h0 = jnp.zeros((1, Hp), jnp.float32)
    _ = jax.lax.fori_loop(0, len0, step, h0)

    # out_desc[i] = unpacked[0, lengths[i]-1] (0 if it lands in seq-0 padding),
    # realized as one one-hot matmul: (Bp, T) @ (T, Hp).
    gathered = jnp.dot(gather_w_ref[...], seq_ref[...],
                       preferred_element_type=jnp.float32)                 # (Bp, Hp)

    out_desc = jnp.dot(gathered, w_desc_ref[...],
                       preferred_element_type=jnp.float32) + b_fc_ref[0:1, :]
    out_img = jnp.tanh(jnp.dot(img_ref[...], w_img_ref[...],
                               preferred_element_type=jnp.float32) + b_fc_ref[1:2, :])
    # TODO(synk): dropout implemented as identity (eval-mode forward).
    # TODO(synk): at production sizes, cast the FC operands to bf16 (MXU-native on
    # v5e/v6e/v7x) and add a parallel Fp grid for v7x's two TensorCores; kept
    # f32 / gridless here to preserve the 1e-5 check at toy sizes.
    out_ref[...] = out_desc * out_img                                      # lane-dense store


def make_vqa_forward(params, seq_len):
    """One-time weight packing + a jitted forward (hoists all per-call prep)."""
    H = int(params["w_hh"].shape[0])
    F_out = int(params["w_desc"].shape[1])
    Hp = _round_up(H, 128)      # lane-aligned gate blocks
    Fp = _round_up(F_out, 128)  # lane-dense output
    T = int(seq_len)

    # ---- one-time weight padding / gate re-packing (zero pads are exact) ----
    w_ih = _pack_gates(params["w_ih"], H, Hp)                                   # (E, 3Hp)
    w_hh = jnp.pad(_pack_gates(params["w_hh"], H, Hp), ((0, Hp - H), (0, 0)))   # (Hp, 3Hp)
    b_rnn = jnp.concatenate([_pack_gates(params["b_ih"], H, Hp),
                             _pack_gates(params["b_hh"], H, Hp)], axis=0)       # (2, 3Hp)
    w_desc = jnp.pad(params["w_desc"], ((0, Hp - H), (0, Fp - F_out)))          # (Hp, Fp)
    w_img = jnp.pad(params["w_img"], ((0, 0), (0, Fp - F_out)))                 # (D_img, Fp)
    b_fc = jnp.concatenate(
        [jnp.pad(params["b_desc"], ((0, 0), (0, Fp - F_out))),
         jnp.pad(params["b_img"], ((0, 0), (0, Fp - F_out)))], axis=0)          # (2, Fp)

    smem = pl.BlockSpec(memory_space=pltpu.MemorySpace.SMEM)
    vmem = pl.BlockSpec(memory_space=pltpu.MemorySpace.VMEM)

    @jax.jit
    def forward(desc, emb_matrix, img):
        B, T_ = desc.shape
        assert T_ == T
        Bp = _round_up(B, 8)    # sublane-aligned batch

        # JAX glue: embedding lookup (seq 0 only), lengths -> one-hot gather weights.
        emb0 = jnp.take(emb_matrix, desc[0].astype(jnp.int32), axis=0).astype(jnp.float32)
        lengths = jnp.sum((desc != 0).astype(jnp.int32), axis=1)               # (B,)
        len0 = lengths[0:1].astype(jnp.int32)                                  # (1,) SMEM scalar
        t_iota = jnp.arange(T, dtype=jnp.int32)
        onehot = t_iota[None, :] == (lengths - 1)[:, None]                     # select t = len[i]-1
        valid0 = t_iota[None, :] < lengths[0]                                  # pad_packed zeros of seq 0
        gather_w = (onehot & valid0).astype(jnp.float32)                       # (B, T)
        gather_w = jnp.pad(gather_w, ((0, Bp - B), (0, 0)))
        img_p = jnp.pad(img.astype(jnp.float32), ((0, Bp - B), (0, 0)))

        out_p = pl.pallas_call(
            vqa_kernel,
            out_shape=jax.ShapeDtypeStruct((Bp, Fp), jnp.float32),
            in_specs=[smem] + [vmem] * 9,
            out_specs=vmem,
            scratch_shapes=[pltpu.VMEM((T, 3 * Hp), jnp.float32),   # gi staging
                            pltpu.VMEM((T, Hp), jnp.float32)],      # h_t staging
            compiler_params=pltpu.CompilerParams(
                vmem_limit_bytes=32 * 1024 * 1024),
        )(len0, emb0, gather_w, img_p,
          w_ih, w_hh, b_rnn,
          w_desc, w_img, b_fc)
        return out_p[:B, :F_out]

    return forward


def vqa_reference(desc, emb_matrix, img, params):
    """Pure-JAX reference mirroring the PyTorch forward semantics."""
    lengths = jnp.sum((desc != 0).astype(jnp.int32), axis=1)      # (B,)
    emb = jnp.take(emb_matrix, desc, axis=0).astype(jnp.float32)  # (B, T, E)
    B, T, _ = emb.shape
    H = params["w_hh"].shape[0]
    h = jnp.zeros((B, H), jnp.float32)
    outs = []
    for t in range(T):
        x_t = emb[:, t, :]
        gi = x_t @ params["w_ih"] + params["b_ih"]
        gh = h @ params["w_hh"] + params["b_hh"]
        r = jax.nn.sigmoid(gi[:, :H] + gh[:, :H])
        z = jax.nn.sigmoid(gi[:, H:2 * H] + gh[:, H:2 * H])
        n = jnp.tanh(gi[:, 2 * H:] + r * gh[:, 2 * H:])
        h = (1.0 - z) * n + z * h
        outs.append(h)
    seq = jnp.stack(outs, axis=1)                                 # (B, T, H)
    mask = (jnp.arange(T)[None, :] < lengths[:, None]).astype(jnp.float32)
    seq = seq * mask[:, :, None]                                  # pad_packed zeros
    gathered = seq[0][lengths - 1]                                # index_select(...)[0]
    out_desc = gathered @ params["w_desc"] + params["b_desc"]
    out_img = jnp.tanh(img @ params["w_img"] + params["b_img"])
    return out_desc * out_img


if __name__ == "__main__":
    B, T, VOCAB, E, H, F_OUT, D_IMG = 4, 8, 32, 16, 32, 32, 64

    key = jax.random.PRNGKey(0)
    k_emb, k_tok, k_img, *k_w = jax.random.split(key, 12)

    emb_matrix = jax.random.normal(k_emb, (VOCAB, E), jnp.float32)

    # right-padded token ids, pad id = 0, all lengths >= 1 (pack_padded requirement)
    seq_lens = np.array([5, 8, 3, 6], dtype=np.int32)
    tok = np.asarray(jax.random.randint(k_tok, (B, T), 1, VOCAB), dtype=np.int32)
    desc = jnp.asarray(np.where(np.arange(T)[None, :] < seq_lens[:, None], tok, 0),
                       jnp.int32)

    img = jax.random.normal(k_img, (B, D_IMG), jnp.float32)

    s = 0.1
    params = {
        "w_ih":   s * jax.random.normal(k_w[0], (E, 3 * H), jnp.float32),
        "w_hh":   s * jax.random.normal(k_w[1], (H, 3 * H), jnp.float32),
        "b_ih":   s * jax.random.normal(k_w[2], (1, 3 * H), jnp.float32),
        "b_hh":   s * jax.random.normal(k_w[3], (1, 3 * H), jnp.float32),
        "w_desc": s * jax.random.normal(k_w[4], (H, F_OUT), jnp.float32),
        "b_desc": s * jax.random.normal(k_w[5], (1, F_OUT), jnp.float32),
        "w_img":  s * jax.random.normal(k_w[6], (D_IMG, F_OUT), jnp.float32),
        "b_img":  s * jax.random.normal(k_w[7], (1, F_OUT), jnp.float32),
    }

    vqa_forward = make_vqa_forward(params, T)   # one-time weight packing + jit
    out = jax.block_until_ready(vqa_forward(desc, emb_matrix, img))
    ref = vqa_reference(desc, emb_matrix, img, params)
    np.testing.assert_allclose(np.asarray(out), np.asarray(ref), rtol=1e-5, atol=1e-5)
    print("KERNEL_OK")
</pallas_src>

<mosaic_0001>
module attributes {stable_mosaic.version = 11 : i64} {
  func.func @vqa_kernel(%arg0: memref<1xi32, #tpu.memory_space<smem>>, %arg1: memref<8x16xf32, #tpu.memory_space<vmem>>, %arg2: memref<8x8xf32, #tpu.memory_space<vmem>>, %arg3: memref<8x64xf32, #tpu.memory_space<vmem>>, %arg4: memref<16x384xf32, #tpu.memory_space<vmem>>, %arg5: memref<128x384xf32, #tpu.memory_space<vmem>>, %arg6: memref<2x384xf32, #tpu.memory_space<vmem>>, %arg7: memref<128x128xf32, #tpu.memory_space<vmem>>, %arg8: memref<64x128xf32, #tpu.memory_space<vmem>>, %arg9: memref<2x128xf32, #tpu.memory_space<vmem>>, %arg10: memref<8x128xf32, #tpu.memory_space<vmem>>, %arg11: memref<8x384xf32, #tpu.memory_space<vmem>>, %arg12: memref<8x128xf32, #tpu.memory_space<vmem>>) attributes {dimension_semantics = [], scalar_prefetch = 0 : i64, scratch_operands = 2 : i64, tpu.core_type = #tpu.core_type<tc>} {
    %c0 = arith.constant 0 : index
    %c0_0 = arith.constant 0 : index
    %0 = vector.load %arg1[%c0, %c0_0] : memref<8x16xf32, #tpu.memory_space<vmem>>, vector<8x16xf32>
    %c0_1 = arith.constant 0 : index
    %c0_2 = arith.constant 0 : index
    %1 = vector.load %arg4[%c0_1, %c0_2] : memref<16x384xf32, #tpu.memory_space<vmem>>, vector<16x384xf32>
    %cst = arith.constant dense<0.000000e+00> : vector<8x384xf32>
    %2 = tpu.matmul %0, %1, %cst {dimension_numbers = #tpu.dot_dimension_numbers<[1], [0], [0], [1], [0, 0, 1, 1], [], []>} : vector<8x16xf32>, vector<16x384xf32>, vector<8x384xf32> -> vector<8x384xf32>
    %c0_3 = arith.constant 0 : index
    %c0_4 = arith.constant 0 : index
    %3 = vector.load %arg6[%c0_3, %c0_4] : memref<2x384xf32, #tpu.memory_space<vmem>>, vector<1x384xf32>
    %4 = vector.broadcast %3 : vector<1x384xf32> to vector<8x384xf32>
    %5 = arith.addf %2, %4 : vector<8x384xf32>
    %c0_5 = arith.constant 0 : index
    %c0_6 = arith.constant 0 : index
    %6 = vector.load %arg11[%c0_5, %c0_6] : memref<8x384xf32, #tpu.memory_space<vmem>>, vector<8x384xf32>
    tpu.vector_store %arg11[%c0_5, %c0_6], %5 {strides = array<i32>} : memref<8x384xf32, #tpu.memory_space<vmem>>, vector<8x384xf32>,
    %cst_7 = arith.constant 0.000000e+00 : f32
    %7 = vector.broadcast %cst_7 : f32 to vector<8x128xf32>
    %c0_8 = arith.constant 0 : index
    %c0_9 = arith.constant 0 : index
    %8 = vector.load %arg12[%c0_8, %c0_9] : memref<8x128xf32, #tpu.memory_space<vmem>>, vector<8x128xf32>
    tpu.vector_store %arg12[%c0_8, %c0_9], %7 {strides = array<i32>} : memref<8x128xf32, #tpu.memory_space<vmem>>, vector<8x128xf32>,
    %c0_10 = arith.constant 0 : index
    %c0_11 = arith.constant 0 : index
    %9 = vector.load %arg5[%c0_10, %c0_11] : memref<128x384xf32, #tpu.memory_space<vmem>>, vector<128x384xf32>
    %c1 = arith.constant 1 : index
    %c0_12 = arith.constant 0 : index
    %10 = vector.load %arg6[%c1, %c0_12] : memref<2x384xf32, #tpu.memory_space<vmem>>, vector<1x384xf32>
    %c0_13 = arith.constant 0 : index
    %11 = memref.load %arg0[%c0_13] : memref<1xi32, #tpu.memory_space<smem>>
    %cst_14 = arith.constant 0.000000e+00 : f32
    %12 = vector.broadcast %cst_14 : f32 to vector<1x128xf32>
    %c0_i32 = arith.constant 0 : i32
    %13 = arith.subi %11, %c0_i32 : i32
    %14 = arith.addi %c0_i32, %13 : i32
    %c1_i32 = arith.constant 1 : i32
    %15 = scf.for %arg13 = %c0_i32 to %14 step %c1_i32 iter_args(%arg14 = %12) -> (vector<1x128xf32>)  : i32 {
      %33 = arith.index_cast %arg13 : i32 to index
      %c0_34 = arith.constant 0 : index
      %34 = vector.load %arg11[%33, %c0_34] : memref<8x384xf32, #tpu.memory_space<vmem>>, vector<1x384xf32>
      %cst_35 = arith.constant dense<0.000000e+00> : vector<1x384xf32>
      %35 = tpu.matmul %arg14, %9, %cst_35 {dimension_numbers = #tpu.dot_dimension_numbers<[1], [0], [0], [1], [0, 0, 1, 1], [], []>} : vector<1x128xf32>, vector<128x384xf32>, vector<1x384xf32> -> vector<1x384xf32>
      %36 = arith.addf %35, %10 : vector<1x384xf32>
      %37 = vector.extract_strided_slice %34 {offsets = [0, 0], sizes = [1, 128], strides = [1, 1]} : vector<1x384xf32> to vector<1x128xf32>
      %38 = vector.extract_strided_slice %36 {offsets = [0, 0], sizes = [1, 128], strides = [1, 1]} : vector<1x384xf32> to vector<1x128xf32>
      %39 = arith.addf %37, %38 : vector<1x128xf32>
      %40 = arith.negf %39 : vector<1x128xf32>
      %41 = math.exp %40 : vector<1x128xf32>
      %cst_36 = arith.constant 1.000000e+00 : f32
      %42 = vector.broadcast %cst_36 : f32 to vector<1x128xf32>
      %43 = arith.addf %42, %41 : vector<1x128xf32>
      %44 = arith.divf %42, %43 : vector<1x128xf32>
      %45 = vector.extract_strided_slice %34 {offsets = [0, 128], sizes = [1, 128], strides = [1, 1]} : vector<1x384xf32> to vector<1x128xf32>
      %46 = vector.extract_strided_slice %36 {offsets = [0, 128], sizes = [1, 128], strides = [1, 1]} : vector<1x384xf32> to vector<1x128xf32>
      %47 = arith.addf %45, %46 : vector<1x128xf32>
      %48 = arith.negf %47 : vector<1x128xf32>
      %49 = math.exp %48 : vector<1x128xf32>
      %cst_37 = arith.constant 1.000000e+00 : f32
      %50 = vector.broadcast %cst_37 : f32 to vector<1x128xf32>
      %51 = arith.addf %50, %49 : vector<1x128xf32>
      %52 = arith.divf %50, %51 : vector<1x128xf32>
      %53 = vector.extract_strided_slice %34 {offsets = [0, 256], sizes = [1, 128], strides = [1, 1]} : vector<1x384xf32> to vector<1x128xf32>
      %54 = vector.extract_strided_slice %36 {offsets = [0, 256], sizes = [1, 128], strides = [1, 1]} : vector<1x384xf32> to vector<1x128xf32>
      %55 = arith.mulf %44, %54 : vector<1x128xf32>
      %56 = arith.addf %53, %55 : vector<1x128xf32>
      %57 = math.tanh %56 : vector<1x128xf32>
      %cst_38 = arith.constant 1.000000e+00 : f32
      %58 = vector.broadcast %cst_38 : f32 to vector<1x128xf32>
      %59 = arith.subf %58, %52 : vector<1x128xf32>
      %60 = arith.mulf %59, %57 : vector<1x128xf32>
      %61 = arith.mulf %52, %arg14 : vector<1x128xf32>
      %62 = arith.addf %60, %61 : vector<1x128xf32>
      %63 = arith.index_cast %arg13 : i32 to index
      %c0_39 = arith.constant 0 : index
      %64 = vector.load %arg12[%63, %c0_39] : memref<8x128xf32, #tpu.memory_space<vmem>>, vector<1x128xf32>
      tpu.vector_store %arg12[%63, %c0_39], %62 {strides = array<i32>} : memref<8x128xf32, #tpu.memory_space<vmem>>, vector<1x128xf32>,
      scf.yield %62 : vector<1x128xf32>
    }
    %c0_15 = arith.constant 0 : index
    %c0_16 = arith.constant 0 : index
    %16 = vector.load %arg2[%c0_15, %c0_16] : memref<8x8xf32, #tpu.memory_space<vmem>>, vector<8x8xf32>
    %c0_17 = arith.constant 0 : index
    %c0_18 = arith.constant 0 : index
    %17 = vector.load %arg12[%c0_17, %c0_18] : memref<8x128xf32, #tpu.memory_space<vmem>>, vector<8x128xf32>
    %cst_19 = arith.constant dense<0.000000e+00> : vector<8x128xf32>
    %18 = tpu.matmul %16, %17, %cst_19 {dimension_numbers = #tpu.dot_dimension_numbers<[1], [0], [0], [1], [0, 0, 1, 1], [], []>} : vector<8x8xf32>, vector<8x128xf32>, vector<8x128xf32> -> vector<8x128xf32>
    %c0_20 = arith.constant 0 : index
    %c0_21 = arith.constant 0 : index
    %19 = vector.load %arg7[%c0_20, %c0_21] : memref<128x128xf32, #tpu.memory_space<vmem>>, vector<128x128xf32>
    %cst_22 = arith.constant dense<0.000000e+00> : vector<8x128xf32>
    %20 = tpu.matmul %18, %19, %cst_22 {dimension_numbers = #tpu.dot_dimension_numbers<[1], [0], [0], [1], [0, 0, 1, 1], [], []>} : vector<8x128xf32>, vector<128x128xf32>, vector<8x128xf32> -> vector<8x128xf32>
    %c0_23 = arith.constant 0 : index
    %c0_24 = arith.constant 0 : index
    %21 = vector.load %arg9[%c0_23, %c0_24] : memref<2x128xf32, #tpu.memory_space<vmem>>, vector<1x128xf32>
    %22 = vector.broadcast %21 : vector<1x128xf32> to vector<8x128xf32>
    %23 = arith.addf %20, %22 : vector<8x128xf32>
    %c0_25 = arith.constant 0 : index
    %c0_26 = arith.constant 0 : index
    %24 = vector.load %arg3[%c0_25, %c0_26] : memref<8x64xf32, #tpu.memory_space<vmem>>, vector<8x64xf32>
    %c0_27 = arith.constant 0 : index
    %c0_28 = arith.constant 0 : index
    %25 = vector.load %arg8[%c0_27, %c0_28] : memref<64x128xf32, #tpu.memory_space<vmem>>, vector<64x128xf32>
    %cst_29 = arith.constant dense<0.000000e+00> : vector<8x128xf32>
    %26 = tpu.matmul %24, %25, %cst_29 {dimension_numbers = #tpu.dot_dimension_numbers<[1], [0], [0], [1], [0, 0, 1, 1], [], []>} : vector<8x64xf32>, vector<64x128xf32>, vector<8x128xf32> -> vector<8x128xf32>
    %c1_30 = arith.constant 1 : index
    %c0_31 = arith.constant 0 : index
    %27 = vector.load %arg9[%c1_30, %c0_31] : memref<2x128xf32, #tpu.memory_space<vmem>>, vector<1x128xf32>
    %28 = vector.broadcast %27 : vector<1x128xf32> to vector<8x128xf32>
    %29 = arith.addf %26, %28 : vector<8x128xf32>
    %30 = math.tanh %29 : vector<8x128xf32>
    %31 = arith.mulf %23, %30 : vector<8x128xf32>
    %c0_32 = arith.constant 0 : index
    %c0_33 = arith.constant 0 : index
    %32 = vector.load %arg10[%c0_32, %c0_33] : memref<8x128xf32, #tpu.memory_space<vmem>>, vector<8x128xf32>
    tpu.vector_store %arg10[%c0_32, %c0_33], %31 {strides = array<i32>} : memref<8x128xf32, #tpu.memory_space<vmem>>, vector<8x128xf32>,
    return
  }
}

</mosaic_0001>

<llo_original>
// kernel: forward.1
$region0: #{forward.1}
  #allocation0 [shape = 'u32[]', space=smem, size = 0x4, offset = 0x4, fixed_abs, tag = 'smem constant byte address 0x4 - core index']
  #allocation1 [shape = 'u32[144,128]{1,0:T(1,128)}', space=vmem, size = 0x12000, scoped, tag = 'internal scratch']
  #allocation2 [shape = 'f32[8,384]{1,0:T(8,128)}', space=vmem, size = 0x3000, scoped, tag = 'scratch operand']
  #allocation3 [shape = 'f32[8,128]{1,0:T(8,128)}', space=vmem, size = 0x1000, scoped, tag = 'scratch operand']
  #allocation4 [shape = 's32[1]{0:T(128)S(6)}', space=smem, size = 0x200, scoped, tag = 'scoped memory for forward.1']
  %s0 = inlined_call_operand.<no memory space> [shape: s32[1], index: 0, kind: input, shape index: {}]
  %s1 = inlined_call_operand.vmem [shape: f32[8,16], index: 1, kind: input, shape index: {}]
  %s2 = inlined_call_operand.vmem [shape: f32[8,8], index: 2, kind: input, shape index: {}]
  %s3 = inlined_call_operand.vmem [shape: f32[8,64], index: 3, kind: input, shape index: {}]
  %s4 = inlined_call_operand.hbm [shape: f32[16,384], index: 4, kind: input, shape index: {}]
  %s5 = inlined_call_operand.hbm [shape: f32[128,384], index: 5, kind: input, shape index: {}]
  %s6 = inlined_call_operand.vmem [shape: f32[2,384], index: 6, kind: input, shape index: {}]
  %s7 = inlined_call_operand.vmem [shape: f32[128,128], index: 7, kind: input, shape index: {}]
  %s8 = inlined_call_operand.vmem [shape: f32[64,128], index: 8, kind: input, shape index: {}]
  %s9 = inlined_call_operand.hbm [shape: f32[2,128], index: 9, kind: input, shape index: {}]
  %s10 = inlined_call_operand.vmem [shape: f32[8,128], index: 10, kind: output, shape index: {}]
  %s11 = sld [smem:[#allocation0]]
  $region69: #{forward.1} parent=0
    _
  %s13 = ssub.s32 1, %s11
  %s14 = scalar_select 0, %s13, %s11
  %15 = sst [smem:[#allocation4]] %s0
  $region1: #{forward.1} parent=0
    #allocation5 [shape = 'u8[24576]{0}', space=vmem, size = 0x6000, scoped, tag = 'input window, operand 4, single buffered']
    #allocation6 [shape = 's32[1]{0}', space=sflag, size = 0x4, scoped, tag = 'scoped memory for forward.1']
    #allocation7 [shape = 'u8[196608]{0}', space=vmem, size = 0x30000, scoped, tag = 'input window, operand 5, single buffered']
    #allocation8 [shape = 's32[1]{0}', space=sflag, size = 0x4, scoped, tag = 'scoped memory for forward.1']
    #allocation9 [shape = 'u8[1024]{0}', space=vmem, size = 0x400, scoped, tag = 'input window, operand 9, single buffered']
    %16 = vsyncpa [#allocation6], 0
    %17 = vsyncpa [#allocation8], 0
    // Predicated region
    $region2: #{forward.1} parent=1 // pred_check
      _
    $region3: #{forward.1} parent=1 // pred_check_branch
      %19 = sbr.rel (0) target = $region5
    $region4: #{forward.1} parent=1 // pred_region
      _
    $region5: #{forward.1} parent=1 // pred_fallthru
      _
    // Predicated region
    $region6: #{forward.1} parent=1 // pred_check
      _
    $region7: #{forward.1} parent=1 // pred_check_branch
      %21 = sbr.rel (0) target = $region9
    $region8: #{forward.1} parent=1 // pred_region
      _
    $region9: #{forward.1} parent=1 // pred_fallthru
      _
    // Predicated region
    $region10: #{forward.1} parent=1 // pred_check
      _
    $region11: #{forward.1} parent=1 // pred_check_branch
      %23 = sbr.rel (0) target = $region13
    $region12: #{forward.1} parent=1 // pred_region
      _
    $region13: #{forward.1} parent=1 // pred_fallthru
      _
    // Predicated region
    $region14: #{forward.1} parent=1 // pred_check
      _
    $region15: #{forward.1} parent=1 // pred_check_branch
      %25 = sbr.rel (0) target = $region17
    $region16: #{forward.1} parent=1 // pred_region
      _
    $region17: #{forward.1} parent=1 // pred_fallthru
      _
    // Predicated region
    $region18: #{forward.1} parent=1 // pred_check
      _
    $region19: #{forward.1} parent=1 // pred_check_branch
      %27 = sbr.rel (0) target = $region21
    $region20: #{forward.1} parent=1 // pred_region
      %s29 = ssub.s32 768, 768
      %30 = vsyncadd [#allocation6], %s29
      %s31 = sshll.u32 [#allocation5], 4
      %s32 = int_to_ptr.vmem [resolvable:$true] %s31
      %37 = dma.hbm_to_vmem [thread:$0]  %s4, 768, %s32, [#allocation6], 384, 384, 24
    $region21: #{forward.1} parent=1 // pred_fallthru
      _
    // Predicated region
    $region22: #{forward.1} parent=1 // pred_check
      _
    $region23: #{forward.1} parent=1 // pred_check_branch
      %39 = sbr.rel (0) target = $region25
    $region24: #{forward.1} parent=1 // pred_region
      %s41 = ssub.s32 6144, 6144
      %42 = vsyncadd [#allocation8], %s41
      %s43 = sshll.u32 [#allocation7], 4
      %s44 = int_to_ptr.vmem [resolvable:$true] %s43
      %49 = dma.hbm_to_vmem [thread:$0]  %s5, 6144, %s44, [#allocation8], 384, 384, 24
    $region25: #{forward.1} parent=1 // pred_fallthru
      _
    // Predicated region
    $region26: #{forward.1} parent=1 // pred_check
      _
    $region27: #{forward.1} parent=1 // pred_check_branch
      %51 = sbr.rel (0) target = $region29
    $region28: #{forward.1} parent=1 // pred_region
      _
    $region29: #{forward.1} parent=1 // pred_fallthru
      _
    // Predicated region
    $region30: #{forward.1} parent=1 // pred_check
      _
    $region31: #{forward.1} parent=1 // pred_check_branch
      %53 = sbr.rel (0) target = $region33
    $region32: #{forward.1} parent=1 // pred_region
      _
    $region33: #{forward.1} parent=1 // pred_fallthru
      _
    // Predicated region
    $region34: #{forward.1} parent=1 // pred_check
      _
    $region35: #{forward.1} parent=1 // pred_check_branch
      %55 = sbr.rel (0) target = $region37
    $region36: #{forward.1} parent=1 // pred_region
      _
    $region37: #{forward.1} parent=1 // pred_fallthru
      _
    // Predicated region
    $region38: #{forward.1} parent=1 // pred_check
      _
    $region39: #{forward.1} parent=1 // pred_check_branch
      %57 = sbr.rel (0) target = $region41
    $region40: #{forward.1} parent=1 // pred_region
      %s59 = ssub.s32 32, 32
      %60 = vsyncadd [#allocation8], %s59
      %s62 = sshll.u32 [#allocation9], 4
      %s63 = int_to_ptr.vmem [resolvable:$true] %s62
      %65 = dma.hbm_to_vmem [thread:$0]  %s9, 32, %s63, [#allocation8]
    $region41: #{forward.1} parent=1 // pred_fallthru
      _
    // Predicated region
    $region42: #{forward.1} parent=1 // pred_check
      _
    $region43: #{forward.1} parent=1 // pred_check_branch
      %67 = sbr.rel (0) target = $region45
    $region44: #{forward.1} parent=1 // pred_region
      %68 = dma.done [#allocation6], 768
    $region45: #{forward.1} parent=1 // pred_fallthru
      _
    // Predicated region
    $region46: #{forward.1} parent=1 // pred_check
      _
    $region47: #{forward.1} parent=1 // pred_check_branch
      %70 = sbr.rel (0) target = $region49
    $region48: #{forward.1} parent=1 // pred_region
      %71 = dma.done [#allocation8], 6144
    $region49: #{forward.1} parent=1 // pred_fallthru
      _
    // Predicated region
    $region50: #{forward.1} parent=1 // pred_check
      _
    $region51: #{forward.1} parent=1 // pred_check_branch
      %73 = sbr.rel (0) target = $region53
    $region52: #{forward.1} parent=1 // pred_region
      %74 = dma.done [#allocation8], 32
    $region53: #{forward.1} parent=1 // pred_fallthru
      _
    %v75 = vld [vmem:[%s1] sm:$0xff]
    %v76 = vld [vmem:[#allocation5] sm:$0xff]
    %v77 = vld [vmem:[#allocation5 + $0x8] sm:$0xff]
    %v78 = vld [vmem:[#allocation5 + $0x10] sm:$0xff]
    %v79 = vld [vmem:[#allocation5 + $0x18] sm:$0xff]
    %v80 = vld [vmem:[#allocation5 + $0x20] sm:$0xff]
    %v81 = vld [vmem:[#allocation5 + $0x28] sm:$0xff]
    %v82 = vld [vmem:[%s6] ss:$2 sm:$0x7]
    %v84 = vlaneseq
    %v85 = vshrl.u32 %v84, 7
    %v86 = vsub.s32 0, %v85
    %v87 = vrot.slane %v82, %v86
    %v88 = vlaneseq
    %v89 = vshrl.u32 %v88, 7
    %v90 = vsub.s32 1, %v89
    %v91 = vrot.slane %v82, %v90
    %v92 = vlaneseq
    %v93 = vshrl.u32 %v92, 7
    %v94 = vsub.s32 2, %v93
    %v95 = vrot.slane %v82, %v94
    %vm99 = vcmask 130048
    %v101 = vsel %vm99, %v75, 0
    %103 = vmatprep.subr.mxu0 0.0
    %104 = vmatpush1.msra.mxu0 0.0
    %105 = vmatprep.subr.mxu0 0.0
    %106 = vmatpush1.msra.mxu0 0.0
    %107 = vmatprep.subr.mxu0 0.0
    %108 = vmatpush1.msra.mxu0 0.0
    %109 = vmatprep.subr.mxu0 0.0
    %110 = vmatpush1.msra.mxu0 0.0
    %111 = vmatprep.subr.mxu0 0.0
    %112 = vmatpush1.msra.mxu0 0.0
    %113 = vmatprep.subr.mxu0 0.0
    %114 = vmatpush1.msra.mxu0 0.0
    %115 = vmatprep.subr.mxu0 0.0
    %116 = vmatpush1.msra.mxu0 0.0
    %117 = vmatprep.subr.mxu0 0.0
    %118 = vmatpush1.msra.mxu0 0.0
    %119 = vmatprep.subr.mxu0 0.0
    %120 = vmatpush1.msra.mxu0 0.0
    %121 = vmatprep.subr.mxu0 0.0
    %122 = vmatpush1.msra.mxu0 0.0
    %123 = vmatprep.subr.mxu0 0.0
    %124 = vmatpush1.msra.mxu0 0.0
    %125 = vmatprep.subr.mxu0 0.0
    %126 = vmatpush1.msra.mxu0 0.0
    %127 = vmatprep.subr.mxu0 0.0
    %128 = vmatpush1.msra.mxu0 0.0
    %129 = vmatprep.subr.mxu0 0.0
    %130 = vmatpush1.msra.mxu0 0.0
    %131 = vmatprep.subr.mxu0 %v80
    %132 = vmatpush1.msra.mxu0 %v79
    %133 = vmatprep.subr.mxu0 %v77
    %134 = vmatpush1.msra.mxu0 %v76
    %135 = vmatprep.subr.mxu0 0.0
    %136 = vmatpush2.msra.mxu0 0.0
    %137 = vmatprep.subr.mxu0 0.0
    %138 = vmatpush2.msra.mxu0 0.0
    %139 = vmatprep.subr.mxu0 0.0
    %140 = vmatpush2.msra.mxu0 0.0
    %141 = vmatprep.subr.mxu0 0.0
    %142 = vmatpush2.msra.mxu0 0.0
    %143 = vmatprep.subr.mxu0 0.0
    %144 = vmatpush2.msra.mxu0 0.0
    %145 = vmatprep.subr.mxu0 0.0
    %146 = vmatpush2.msra.mxu0 0.0
    %147 = vmatprep.subr.mxu0 0.0
    %148 = vmatpush2.msra.mxu0 0.0
    %149 = vmatprep.subr.mxu0 0.0
    %150 = vmatpush2.msra.mxu0 0.0
    %151 = vmatprep.subr.mxu0 0.0
    %152 = vmatpush2.msra.mxu0 0.0
    %153 = vmatprep.subr.mxu0 0.0
    %154 = vmatpush2.msra.mxu0 0.0
    %155 = vmatprep.subr.mxu0 0.0
    %156 = vmatpush2.msra.mxu0 0.0
    %157 = vmatprep.subr.mxu0 0.0
    %158 = vmatpush2.msra.mxu0 0.0
    %159 = vmatprep.subr.mxu0 0.0
    %160 = vmatpush2.msra.mxu0 0.0
    %161 = vmatprep.subr.mxu0 0.0
    %162 = vmatpush2.msra.mxu0 0.0
    %163 = vmatprep.subr.mxu0 0.0
    %164 = vmatpush2.msra.mxu0 0.0
    %165 = vmatprep.subr.mxu0 0.0
    %166 = vmatpush2.msra.mxu0 0.0
    %167 = vmatprep.mubr.f32.mxu0 0.0
    %168 = vmatmul.mubr.f32.gmra.mxu0 %v101
    %v169 = vpop.f32.mrf.mxu0
    %v170 = vadd.f32 %v87, %v169
    %v171 = vpop.f32.mrf.mxu0
    %v172 = vadd.f32 %v91, %v171
    %173 = vdwg.mxu0
    %174 = vmatprep.subr.mxu0 0.0
    %175 = vmatpush1.msra.mxu0 0.0
    %176 = vmatprep.subr.mxu0 0.0
    %177 = vmatpush1.msra.mxu0 0.0
    %178 = vmatprep.subr.mxu0 0.0
    %179 = vmatpush1.msra.mxu0 0.0
    %180 = vmatprep.subr.mxu0 0.0
    %181 = vmatpush1.msra.mxu0 0.0
    %182 = vmatprep.subr.mxu0 0.0
    %183 = vmatpush1.msra.mxu0 0.0
    %184 = vmatprep.subr.mxu0 0.0
    %185 = vmatpush1.msra.mxu0 0.0
    %186 = vmatprep.subr.mxu0 0.0
    %187 = vmatpush1.msra.mxu0 0.0
    %188 = vmatprep.subr.mxu0 0.0
    %189 = vmatpush1.msra.mxu0 0.0
    %190 = vmatprep.subr.mxu0 0.0
    %191 = vmatpush1.msra.mxu0 0.0
    %192 = vmatprep.subr.mxu0 0.0
    %193 = vmatpush1.msra.mxu0 0.0
    %194 = vmatprep.subr.mxu0 0.0
    %195 = vmatpush1.msra.mxu0 0.0
    %196 = vmatprep.subr.mxu0 0.0
    %197 = vmatpush1.msra.mxu0 0.0
    %198 = vmatprep.subr.mxu0 0.0
    %199 = vmatpush1.msra.mxu0 0.0
    %200 = vmatprep.subr.mxu0 0.0
    %201 = vmatpush1.msra.mxu0 0.0
    %202 = vmatprep.subr.mxu0 0.0
    %203 = vmatpush1.msra.mxu0 %v81
    %204 = vmatprep.subr.mxu0 0.0
    %205 = vmatpush1.msra.mxu0 %v78
    %206 = vmatprep.subr.mxu0 0.0
    %207 = vmatpush2.msra.mxu0 0.0
    %208 = vmatprep.subr.mxu0 0.0
    %209 = vmatpush2.msra.mxu0 0.0
    %210 = vmatprep.subr.mxu0 0.0
    %211 = vmatpush2.msra.mxu0 0.0
    %212 = vmatprep.subr.mxu0 0.0
    %213 = vmatpush2.msra.mxu0 0.0
    %214 = vmatprep.subr.mxu0 0.0
    %215 = vmatpush2.msra.mxu0 0.0
    %216 = vmatprep.subr.mxu0 0.0
    %217 = vmatpush2.msra.mxu0 0.0
    %218 = vmatprep.subr.mxu0 0.0
    %219 = vmatpush2.msra.mxu0 0.0
    %220 = vmatprep.subr.mxu0 0.0
    %221 = vmatpush2.msra.mxu0 0.0
    %222 = vmatprep.subr.mxu0 0.0
    %223 = vmatpush2.msra.mxu0 0.0
    %224 = vmatprep.subr.mxu0 0.0
    %225 = vmatpush2.msra.mxu0 0.0
    %226 = vmatprep.subr.mxu0 0.0
    %227 = vmatpush2.msra.mxu0 0.0
    %228 = vmatprep.subr.mxu0 0.0
    %229 = vmatpush2.msra.mxu0 0.0
    %230 = vmatprep.subr.mxu0 0.0
    %231 = vmatpush2.msra.mxu0 0.0
    %232 = vmatprep.subr.mxu0 0.0
    %233 = vmatpush2.msra.mxu0 0.0
    %234 = vmatprep.subr.mxu0 0.0
    %235 = vmatpush2.msra.mxu0 0.0
    %236 = vmatprep.subr.mxu0 0.0
    %237 = vmatpush2.msra.mxu0 0.0
    %238 = vmatprep.mubr.f32.mxu0 0.0
    %239 = vmatmul.mubr.f32.gmra.mxu0 %v101
    %v240 = vpop.f32.mrf.mxu0
    %v241 = vadd.f32 %v95, %v240
    %v242 = vpop.f32.mrf.mxu0
    %243 = vdwg.mxu0
    %244 = vst [vmem:[#allocation2] sm:$0xff] %v170
    %245 = vst [vmem:[#allocation2 + $0x8] sm:$0xff] %v172
    %246 = vst [vmem:[#allocation2 + $0x10] sm:$0xff] %v241
    %247 = vst [vmem:[#allocation3] sm:$0xff] 0.0
    %v248 = vld [vmem:[#allocation7] sm:$0xff]
    %v249 = vld [vmem:[#allocation7 + $0x8] sm:$0xff]
    %v250 = vld [vmem:[#allocation7 + $0x10] sm:$0xff]
    %v251 = vld [vmem:[#allocation7 + $0x18] sm:$0xff]
    %v252 = vld [vmem:[#allocation7 + $0x20] sm:$0xff]
    %v253 = vld [vmem:[#allocation7 + $0x28] sm:$0xff]
    %v254 = vld [vmem:[#allocation7 + $0x30] sm:$0xff]
    %v255 = vld [vmem:[#allocation7 + $0x38] sm:$0xff]
    %v256 = vld [vmem:[#allocation7 + $0x40] sm:$0xff]
    %v257 = vld [vmem:[#allocation7 + $0x48] sm:$0xff]
    %v258 = vld [vmem:[#allocation7 + $0x50] sm:$0xff]
    %v259 = vld [vmem:[#allocation7 + $0x58] sm:$0xff]
    %v260 = vld [vmem:[#allocation7 + $0x60] sm:$0xff]
    %v261 = vld [vmem:[#allocation7 + $0x68] sm:$0xff]
    %v262 = vld [vmem:[#allocation7 + $0x70] sm:$0xff]
    %v263 = vld [vmem:[#allocation7 + $0x78] sm:$0xff]
    %v264 = vld [vmem:[#allocation7 + $0x80] sm:$0xff]
    %v265 = vld [vmem:[#allocation7 + $0x88] sm:$0xff]
    %v266 = vld [vmem:[#allocation7 + $0x90] sm:$0xff]
    %v267 = vld [vmem:[#allocation7 + $0x98] sm:$0xff]
    %v268 = vld [vmem:[#allocation7 + $0xa0] sm:$0xff]
    %v269 = vld [vmem:[#allocation7 + $0xa8] sm:$0xff]
    %v270 = vld [vmem:[#allocation7 + $0xb0] sm:$0xff]
    %v271 = vld [vmem:[#allocation7 + $0xb8] sm:$0xff]
    %v272 = vld [vmem:[#allocation7 + $0xc0] sm:$0xff]
    %v273 = vld [vmem:[#allocation7 + $0xc8] sm:$0xff]
    %v274 = vld [vmem:[#allocation7 + $0xd0] sm:$0xff]
    %v275 = vld [vmem:[#allocation7 + $0xd8] sm:$0xff]
    %v276 = vld [vmem:[#allocation7 + $0xe0] sm:$0xff]
    %v277 = vld [vmem:[#allocation7 + $0xe8] sm:$0xff]
    %v278 = vld [vmem:[#allocation7 + $0xf0] sm:$0xff]
    %v279 = vld [vmem:[#allocation7 + $0xf8] sm:$0xff]
    %v280 = vld [vmem:[#allocation7 + $0x100] sm:$0xff]
    %v281 = vld [vmem:[#allocation7 + $0x108] sm:$0xff]
    %v282 = vld [vmem:[#allocation7 + $0x110] sm:$0xff]
    %v283 = vld [vmem:[#allocation7 + $0x118] sm:$0xff]
    %v284 = vld [vmem:[#allocation7 + $0x120] sm:$0xff]
    %v285 = vld [vmem:[#allocation7 + $0x128] sm:$0xff]
    %v286 = vld [vmem:[#allocation7 + $0x130] sm:$0xff]
    %v287 = vld [vmem:[#allocation7 + $0x138] sm:$0xff]
    %v288 = vld [vmem:[#allocation7 + $0x140] sm:$0xff]
    %v289 = vld [vmem:[#allocation7 + $0x148] sm:$0xff]
    %v290 = vld [vmem:[#allocation7 + $0x150] sm:$0xff]
    %v291 = vld [vmem:[#allocation7 + $0x158] sm:$0xff]
    %v292 = vld [vmem:[#allocation7 + $0x160] sm:$0xff]
    %v293 = vld [vmem:[#allocation7 + $0x168] sm:$0xff]
    %v294 = vld [vmem:[#allocation7 + $0x170] sm:$0xff]
    %v295 = vld [vmem:[#allocation7 + $0x178] sm:$0xff]
    %s296 = scalar_lea.vmem %s6, 1
    %v297 = vld [vmem:[%s296] ss:$2 sm:$0x7]
    %s298 = sld [smem:[#allocation4]]
    // While loop
    $region54: #{forward.1} parent=1 // loop_pre_header
      _
    $region55: #{forward.1} parent=1 // loop_header
      %s300 = sphi 0, %s302
      %p301 = scmp.ge.s32.totalorder %s300, %s298
      %v305 = vphi 0.0, %v497
    $region56: #{forward.1} parent=1 // loop_header_branch
      %304 = sbr.rel (%p301) target = $region60
    $region57: #{forward.1} parent=1 // loop_body
      %s306 = sshra.s32 %s300, 3
      %s307 = sand.u32 %s300, 7
      %s308 = sshra.s32 %s300, 3
      %s309 = sand.u32 %s300, 7
      %s310 = smul.u32 %s306, 3
      %s311 = smul.u32 %s310, 8
      %s312 = sadd.s32 %s311, %s309
      %s313 = scalar_lea.vmem [#allocation2], %s312
      %v314 = vld [vmem:[%s313] ss:$8 sm:$0x7]
      %v316 = vlaneseq
      %v317 = vshrl.u32 %v316, 7
      %v318 = vsub.s32 0, %v317
      %v319 = vrot.slane %v297, %v318
      %v320 = vlaneseq
      %v321 = vshrl.u32 %v320, 7
      %v322 = vsub.s32 1, %v321
      %v323 = vrot.slane %v297, %v322
      %v324 = vlaneseq
      %v325 = vshrl.u32 %v324, 7
      %v326 = vsub.s32 2, %v325
      %v327 = vrot.slane %v297, %v326
      %331 = vmatprep.subr.mxu0 %v294
      %332 = vmatpush1.msra.mxu0 %v293
      %333 = vmatprep.subr.mxu0 %v291
      %334 = vmatpush1.msra.mxu0 %v290
      %335 = vmatprep.subr.mxu0 %v288
      %336 = vmatpush1.msra.mxu0 %v287
      %337 = vmatprep.subr.mxu0 %v285
      %338 = vmatpush1.msra.mxu0 %v284
      %339 = vmatprep.subr.mxu0 %v282
      %340 = vmatpush1.msra.mxu0 %v281
      %341 = vmatprep.subr.mxu0 %v279
      %342 = vmatpush1.msra.mxu0 %v278
      %343 = vmatprep.subr.mxu0 %v276
      %344 = vmatpush1.msra.mxu0 %v275
      %345 = vmatprep.subr.mxu0 %v273
      %346 = vmatpush1.msra.mxu0 %v272
      %347 = vmatprep.subr.mxu0 %v270
      %348 = vmatpush1.msra.mxu0 %v269
      %349 = vmatprep.subr.mxu0 %v267
      %350 = vmatpush1.msra.mxu0 %v266
      %351 = vmatprep.subr.mxu0 %v264
      %352 = vmatpush1.msra.mxu0 %v263
      %353 = vmatprep.subr.mxu0 %v261
      %354 = vmatpush1.msra.mxu0 %v260
      %355 = vmatprep.subr.mxu0 %v258
      %356 = vmatpush1.msra.mxu0 %v257
      %357 = vmatprep.subr.mxu0 %v255
      %358 = vmatpush1.msra.mxu0 %v254
      %359 = vmatprep.subr.mxu0 %v252
      %360 = vmatpush1.msra.mxu0 %v251
      %361 = vmatprep.subr.mxu0 %v249
      %362 = vmatpush1.msra.mxu0 %v248
      %363 = vmatprep.subr.mxu0 0.0
      %364 = vmatpush2.msra.mxu0 0.0
      %365 = vmatprep.subr.mxu0 0.0
      %366 = vmatpush2.msra.mxu0 0.0
      %367 = vmatprep.subr.mxu0 0.0
      %368 = vmatpush2.msra.mxu0 0.0
      %369 = vmatprep.subr.mxu0 0.0
      %370 = vmatpush2.msra.mxu0 0.0
      %371 = vmatprep.subr.mxu0 0.0
      %372 = vmatpush2.msra.mxu0 0.0
      %373 = vmatprep.subr.mxu0 0.0
      %374 = vmatpush2.msra.mxu0 0.0
      %375 = vmatprep.subr.mxu0 0.0
      %376 = vmatpush2.msra.mxu0 0.0
      %377 = vmatprep.subr.mxu0 0.0
      %378 = vmatpush2.msra.mxu0 0.0
      %379 = vmatprep.subr.mxu0 0.0
      %380 = vmatpush2.msra.mxu0 0.0
      %381 = vmatprep.subr.mxu0 0.0
      %382 = vmatpush2.msra.mxu0 0.0
      %383 = vmatprep.subr.mxu0 0.0
      %384 = vmatpush2.msra.mxu0 0.0
      %385 = vmatprep.subr.mxu0 0.0
      %386 = vmatpush2.msra.mxu0 0.0
      %387 = vmatprep.subr.mxu0 0.0
      %388 = vmatpush2.msra.mxu0 0.0
      %389 = vmatprep.subr.mxu0 0.0
      %390 = vmatpush2.msra.mxu0 0.0
      %391 = vmatprep.subr.mxu0 0.0
      %392 = vmatpush2.msra.mxu0 0.0
      %393 = vmatprep.subr.mxu0 0.0
      %394 = vmatpush2.msra.mxu0 0.0
      %395 = vmatprep.mubr.f32.mxu0 0.0
      %396 = vmatmul.mubr.f32.gmra.mxu0 %v305
      %v397 = vpop.f32.mrf.mxu0
      %v398 = vadd.f32 %v319, %v397
      %v399 = vpop.f32.mrf.mxu0
      %v400 = vadd.f32 %v323, %v399
      %401 = vdwg.mxu0
      %402 = vmatprep.subr.mxu0 0.0
      %403 = vmatpush1.msra.mxu0 %v295
      %404 = vmatprep.subr.mxu0 0.0
      %405 = vmatpush1.msra.mxu0 %v292
      %406 = vmatprep.subr.mxu0 0.0
      %407 = vmatpush1.msra.mxu0 %v289
      %408 = vmatprep.subr.mxu0 0.0
      %409 = vmatpush1.msra.mxu0 %v286
      %410 = vmatprep.subr.mxu0 0.0
      %411 = vmatpush1.msra.mxu0 %v283
      %412 = vmatprep.subr.mxu0 0.0
      %413 = vmatpush1.msra.mxu0 %v280
      %414 = vmatprep.subr.mxu0 0.0
      %415 = vmatpush1.msra.mxu0 %v277
      %416 = vmatprep.subr.mxu0 0.0
      %417 = vmatpush1.msra.mxu0 %v274
      %418 = vmatprep.subr.mxu0 0.0
      %419 = vmatpush1.msra.mxu0 %v271
      %420 = vmatprep.subr.mxu0 0.0
      %421 = vmatpush1.msra.mxu0 %v268
      %422 = vmatprep.subr.mxu0 0.0
      %423 = vmatpush1.msra.mxu0 %v265
      %424 = vmatprep.subr.mxu0 0.0
      %425 = vmatpush1.msra.mxu0 %v262
      %426 = vmatprep.subr.mxu0 0.0
      %427 = vmatpush1.msra.mxu0 %v259
      %428 = vmatprep.subr.mxu0 0.0
      %429 = vmatpush1.msra.mxu0 %v256
      %430 = vmatprep.subr.mxu0 0.0
      %431 = vmatpush1.msra.mxu0 %v253
      %432 = vmatprep.subr.mxu0 0.0
      %433 = vmatpush1.msra.mxu0 %v250
      %434 = vmatprep.subr.mxu0 0.0
      %435 = vmatpush2.msra.mxu0 0.0
      %436 = vmatprep.subr.mxu0 0.0
      %437 = vmatpush2.msra.mxu0 0.0
      %438 = vmatprep.subr.mxu0 0.0
      %439 = vmatpush2.msra.mxu0 0.0
      %440 = vmatprep.subr.mxu0 0.0
      %441 = vmatpush2.msra.mxu0 0.0
      %442 = vmatprep.subr.mxu0 0.0
      %443 = vmatpush2.msra.mxu0 0.0
      %444 = vmatprep.subr.mxu0 0.0
      %445 = vmatpush2.msra.mxu0 0.0
      %446 = vmatprep.subr.mxu0 0.0
      %447 = vmatpush2.msra.mxu0 0.0
      %448 = vmatprep.subr.mxu0 0.0
      %449 = vmatpush2.msra.mxu0 0.0
      %450 = vmatprep.subr.mxu0 0.0
      %451 = vmatpush2.msra.mxu0 0.0
      %452 = vmatprep.subr.mxu0 0.0
      %453 = vmatpush2.msra.mxu0 0.0
      %454 = vmatprep.subr.mxu0 0.0
      %455 = vmatpush2.msra.mxu0 0.0
      %456 = vmatprep.subr.mxu0 0.0
      %457 = vmatpush2.msra.mxu0 0.0
      %458 = vmatprep.subr.mxu0 0.0
      %459 = vmatpush2.msra.mxu0 0.0
      %460 = vmatprep.subr.mxu0 0.0
      %461 = vmatpush2.msra.mxu0 0.0
      %462 = vmatprep.subr.mxu0 0.0
      %463 = vmatpush2.msra.mxu0 0.0
      %464 = vmatprep.subr.mxu0 0.0
      %465 = vmatpush2.msra.mxu0 0.0
      %466 = vmatprep.mubr.f32.mxu0 0.0
      %467 = vmatmul.mubr.f32.gmra.mxu0 %v305
      %v468 = vpop.f32.mrf.mxu0
      %v469 = vadd.f32 %v327, %v468
      %v470 = vpop.f32.mrf.mxu0
      %471 = vdwg.mxu0
      %v472 = vadd.f32 %v314, %v398
      %v473 = vxor.u32 %v472, 2147483648
      %v474 = vmul.f32 %v473, 1.442695
      %v475 = vpow.pop %v474
      %v476 = vadd.f32 %v475, 1.0
      %v477 = vrcp.pop %v476
      %v478 = vmul.f32 1.0, %v477
      %v480 = vrot.slane %v314, 1
      %v482 = vadd.f32 %v480, %v400
      %v483 = vxor.u32 %v482, 2147483648
      %v484 = vmul.f32 %v483, 1.442695
      %v485 = vpow.pop %v484
      %v486 = vadd.f32 %v485, 1.0
      %v487 = vrcp.pop %v486
      %v488 = vmul.f32 1.0, %v487
      %v489 = vmul.f32 %v478, %v469
      %v490 = vrot.slane %v314, 2
      %v492 = vadd.f32 %v490, %v489
      %v493 = vtanh.pop %v492
      %v494 = vsub.f32 1.0, %v488
      %v495 = vmul.f32 %v494, %v493
      %v496 = vmul.f32 %v488, %v305
      %v497 = vadd.f32 %v495, %v496
      %s498 = scalar_lea.vmem [#allocation3], %s300
      %499 = vst [vmem:[%s498] sm:$0x1] %v497
    $region58: #{forward.1} parent=1 // loop_footer
      %s302 = sadd.s32 %s300, 1
    $region59: #{forward.1} parent=1 // loop_footer_branch
      %299 = sbr.rel target = $region55
    $region60: #{forward.1} parent=1 // loop_exit
      _
    %v500 = vld [vmem:[%s2] sm:$0xff]
    %v501 = vld [vmem:[#allocation3] sm:$0xff]
    %vm502 = vcmask 64512
    %v504 = vsel %vm502, %v500, 0
    %506 = vmatprep.subr.mxu0 0.0
    %507 = vmatpush1.msra.mxu0 0.0
    %508 = vmatprep.subr.mxu0 0.0
    %509 = vmatpush1.msra.mxu0 0.0
    %510 = vmatprep.subr.mxu0 0.0
    %511 = vmatpush1.msra.mxu0 0.0
    %512 = vmatprep.subr.mxu0 0.0
    %513 = vmatpush1.msra.mxu0 0.0
    %514 = vmatprep.subr.mxu0 0.0
    %515 = vmatpush1.msra.mxu0 0.0
    %516 = vmatprep.subr.mxu0 0.0
    %517 = vmatpush1.msra.mxu0 0.0
    %518 = vmatprep.subr.mxu0 0.0
    %519 = vmatpush1.msra.mxu0 0.0
    %520 = vmatprep.subr.mxu0 0.0
    %521 = vmatpush1.msra.mxu0 0.0
    %522 = vmatprep.subr.mxu0 0.0
    %523 = vmatpush1.msra.mxu0 0.0
    %524 = vmatprep.subr.mxu0 0.0
    %525 = vmatpush1.msra.mxu0 0.0
    %526 = vmatprep.subr.mxu0 0.0
    %527 = vmatpush1.msra.mxu0 0.0
    %528 = vmatprep.subr.mxu0 0.0
    %529 = vmatpush1.msra.mxu0 0.0
    %530 = vmatprep.subr.mxu0 0.0
    %531 = vmatpush1.msra.mxu0 0.0
    %532 = vmatprep.subr.mxu0 0.0
    %533 = vmatpush1.msra.mxu0 0.0
    %534 = vmatprep.subr.mxu0 0.0
    %535 = vmatpush1.msra.mxu0 0.0
    %536 = vmatprep.subr.mxu0 0.0
    %537 = vmatpush1.msra.mxu0 %v501
    %538 = vmatprep.subr.mxu0 0.0
    %539 = vmatpush2.msra.mxu0 0.0
    %540 = vmatprep.subr.mxu0 0.0
    %541 = vmatpush2.msra.mxu0 0.0
    %542 = vmatprep.subr.mxu0 0.0
    %543 = vmatpush2.msra.mxu0 0.0
    %544 = vmatprep.subr.mxu0 0.0
    %545 = vmatpush2.msra.mxu0 0.0
    %546 = vmatprep.subr.mxu0 0.0
    %547 = vmatpush2.msra.mxu0 0.0
    %548 = vmatprep.subr.mxu0 0.0
    %549 = vmatpush2.msra.mxu0 0.0
    %550 = vmatprep.subr.mxu0 0.0
    %551 = vmatpush2.msra.mxu0 0.0
    %552 = vmatprep.subr.mxu0 0.0
    %553 = vmatpush2.msra.mxu0 0.0
    %554 = vmatprep.subr.mxu0 0.0
    %555 = vmatpush2.msra.mxu0 0.0
    %556 = vmatprep.subr.mxu0 0.0
    %557 = vmatpush2.msra.mxu0 0.0
    %558 = vmatprep.subr.mxu0 0.0
    %559 = vmatpush2.msra.mxu0 0.0
    %560 = vmatprep.subr.mxu0 0.0
    %561 = vmatpush2.msra.mxu0 0.0
    %562 = vmatprep.subr.mxu0 0.0
    %563 = vmatpush2.msra.mxu0 0.0
    %564 = vmatprep.subr.mxu0 0.0
    %565 = vmatpush2.msra.mxu0 0.0
    %566 = vmatprep.subr.mxu0 0.0
    %567 = vmatpush2.msra.mxu0 0.0
    %568 = vmatprep.subr.mxu0 0.0
    %569 = vmatpush2.msra.mxu0 0.0
    %570 = vmatprep.mubr.f32.mxu0 0.0
    %571 = vmatmul.mubr.f32.gmra.mxu0 %v504
    %v572 = vpop.f32.mrf.mxu0
    %v573 = vadd.f32 0.0, %v572
    %v574 = vpop.f32.mrf.mxu0
    %575 = vdwg.mxu0
    %v576 = vld [vmem:[%s7] sm:$0xff]
    %v577 = vld [vmem:[%s7 + $0x8] sm:$0xff]
    %v578 = vld [vmem:[%s7 + $0x10] sm:$0xff]
    %v579 = vld [vmem:[%s7 + $0x18] sm:$0xff]
    %v580 = vld [vmem:[%s7 + $0x20] sm:$0xff]
    %v581 = vld [vmem:[%s7 + $0x28] sm:$0xff]
    %v582 = vld [vmem:[%s7 + $0x30] sm:$0xff]
    %v583 = vld [vmem:[%s7 + $0x38] sm:$0xff]
    %v584 = vld [vmem:[%s7 + $0x40] sm:$0xff]
    %v585 = vld [vmem:[%s7 + $0x48] sm:$0xff]
    %v586 = vld [vmem:[%s7 + $0x50] sm:$0xff]
    %v587 = vld [vmem:[%s7 + $0x58] sm:$0xff]
    %v588 = vld [vmem:[%s7 + $0x60] sm:$0xff]
    %v589 = vld [vmem:[%s7 + $0x68] sm:$0xff]
    %v590 = vld [vmem:[%s7 + $0x70] sm:$0xff]
    %v591 = vld [vmem:[%s7 + $0x78] sm:$0xff]
    %v592 = vld [vmem:[#allocation9] sm:$0x1]
    %v593 = vlaneseq
    %v594 = vshrl.u32 %v593, 7
    %v595 = vsub.s32 0, %v594
    %v596 = vrot.slane %v592, %v595
    %597 = vmatprep.subr.mxu0 0.0
    %598 = vmatpush1.msra.mxu0 %v591
    %599 = vmatprep.subr.mxu0 0.0
    %600 = vmatpush1.msra.mxu0 %v590
    %601 = vmatprep.subr.mxu0 0.0
    %602 = vmatpush1.msra.mxu0 %v589
    %603 = vmatprep.subr.mxu0 0.0
    %604 = vmatpush1.msra.mxu0 %v588
    %605 = vmatprep.subr.mxu0 0.0
    %606 = vmatpush1.msra.mxu0 %v587
    %607 = vmatprep.subr.mxu0 0.0
    %608 = vmatpush1.msra.mxu0 %v586
    %609 = vmatprep.subr.mxu0 0.0
    %610 = vmatpush1.msra.mxu0 %v585
    %611 = vmatprep.subr.mxu0 0.0
    %612 = vmatpush1.msra.mxu0 %v584
    %613 = vmatprep.subr.mxu0 0.0
    %614 = vmatpush1.msra.mxu0 %v583
    %615 = vmatprep.subr.mxu0 0.0
    %616 = vmatpush1.msra.mxu0 %v582
    %617 = vmatprep.subr.mxu0 0.0
    %618 = vmatpush1.msra.mxu0 %v581
    %619 = vmatprep.subr.mxu0 0.0
    %620 = vmatpush1.msra.mxu0 %v580
    %621 = vmatprep.subr.mxu0 0.0
    %622 = vmatpush1.msra.mxu0 %v579
    %623 = vmatprep.subr.mxu0 0.0
    %624 = vmatpush1.msra.mxu0 %v578
    %625 = vmatprep.subr.mxu0 0.0
    %626 = vmatpush1.msra.mxu0 %v577
    %627 = vmatprep.subr.mxu0 0.0
    %628 = vmatpush1.msra.mxu0 %v576
    %629 = vmatprep.subr.mxu0 0.0
    %630 = vmatpush2.msra.mxu0 0.0
    %631 = vmatprep.subr.mxu0 0.0
    %632 = vmatpush2.msra.mxu0 0.0
    %633 = vmatprep.subr.mxu0 0.0
    %634 = vmatpush2.msra.mxu0 0.0
    %635 = vmatprep.subr.mxu0 0.0
    %636 = vmatpush2.msra.mxu0 0.0
    %637 = vmatprep.subr.mxu0 0.0
    %638 = vmatpush2.msra.mxu0 0.0
    %639 = vmatprep.subr.mxu0 0.0
    %640 = vmatpush2.msra.mxu0 0.0
    %641 = vmatprep.subr.mxu0 0.0
    %642 = vmatpush2.msra.mxu0 0.0
    %643 = vmatprep.subr.mxu0 0.0
    %644 = vmatpush2.msra.mxu0 0.0
    %645 = vmatprep.subr.mxu0 0.0
    %646 = vmatpush2.msra.mxu0 0.0
    %647 = vmatprep.subr.mxu0 0.0
    %648 = vmatpush2.msra.mxu0 0.0
    %649 = vmatprep.subr.mxu0 0.0
    %650 = vmatpush2.msra.mxu0 0.0
    %651 = vmatprep.subr.mxu0 0.0
    %652 = vmatpush2.msra.mxu0 0.0
    %653 = vmatprep.subr.mxu0 0.0
    %654 = vmatpush2.msra.mxu0 0.0
    %655 = vmatprep.subr.mxu0 0.0
    %656 = vmatpush2.msra.mxu0 0.0
    %657 = vmatprep.subr.mxu0 0.0
    %658 = vmatpush2.msra.mxu0 0.0
    %659 = vmatprep.subr.mxu0 0.0
    %660 = vmatpush2.msra.mxu0 0.0
    %661 = vmatprep.mubr.f32.mxu0 0.0
    %662 = vmatmul.mubr.f32.gmra.mxu0 %v573
    %v663 = vpop.f32.mrf.mxu0
    %v664 = vadd.f32 %v596, %v663
    %v665 = vpop.f32.mrf.mxu0
    %666 = vdwg.mxu0
    %v667 = vld [vmem:[%s3] sm:$0xff]
    %v668 = vld [vmem:[%s8] sm:$0xff]
    %v669 = vld [vmem:[%s8 + $0x8] sm:$0xff]
    %v670 = vld [vmem:[%s8 + $0x10] sm:$0xff]
    %v671 = vld [vmem:[%s8 + $0x18] sm:$0xff]
    %v672 = vld [vmem:[%s8 + $0x20] sm:$0xff]
    %v673 = vld [vmem:[%s8 + $0x28] sm:$0xff]
    %v674 = vld [vmem:[%s8 + $0x30] sm:$0xff]
    %v675 = vld [vmem:[%s8 + $0x38] sm:$0xff]
    %v676 = vld [vmem:[#allocation9 + $0x1] sm:$0x1]
    %v677 = vlaneseq
    %v678 = vshrl.u32 %v677, 7
    %v679 = vsub.s32 0, %v678
    %v680 = vrot.slane %v676, %v679
    %vm681 = vcmask 523264
    %v683 = vsel %vm681, %v667, 0
    %685 = vmatprep.subr.mxu0 0.0
    %686 = vmatpush1.msra.mxu0 0.0
    %687 = vmatprep.subr.mxu0 0.0
    %688 = vmatpush1.msra.mxu0 0.0
    %689 = vmatprep.subr.mxu0 0.0
    %690 = vmatpush1.msra.mxu0 0.0
    %691 = vmatprep.subr.mxu0 0.0
    %692 = vmatpush1.msra.mxu0 0.0
    %693 = vmatprep.subr.mxu0 0.0
    %694 = vmatpush1.msra.mxu0 0.0
    %695 = vmatprep.subr.mxu0 0.0
    %696 = vmatpush1.msra.mxu0 0.0
    %697 = vmatprep.subr.mxu0 0.0
    %698 = vmatpush1.msra.mxu0 0.0
    %699 = vmatprep.subr.mxu0 0.0
    %700 = vmatpush1.msra.mxu0 0.0
    %701 = vmatprep.subr.mxu0 0.0
    %702 = vmatpush1.msra.mxu0 %v675
    %703 = vmatprep.subr.mxu0 0.0
    %704 = vmatpush1.msra.mxu0 %v674
    %705 = vmatprep.subr.mxu0 0.0
    %706 = vmatpush1.msra.mxu0 %v673
    %707 = vmatprep.subr.mxu0 0.0
    %708 = vmatpush1.msra.mxu0 %v672
    %709 = vmatprep.subr.mxu0 0.0
    %710 = vmatpush1.msra.mxu0 %v671
    %711 = vmatprep.subr.mxu0 0.0
    %712 = vmatpush1.msra.mxu0 %v670
    %713 = vmatprep.subr.mxu0 0.0
    %714 = vmatpush1.msra.mxu0 %v669
    %715 = vmatprep.subr.mxu0 0.0
    %716 = vmatpush1.msra.mxu0 %v668
    %717 = vmatprep.subr.mxu0 0.0
    %718 = vmatpush2.msra.mxu0 0.0
    %719 = vmatprep.subr.mxu0 0.0
    %720 = vmatpush2.msra.mxu0 0.0
    %721 = vmatprep.subr.mxu0 0.0
    %722 = vmatpush2.msra.mxu0 0.0
    %723 = vmatprep.subr.mxu0 0.0
    %724 = vmatpush2.msra.mxu0 0.0
    %725 = vmatprep.subr.mxu0 0.0
    %726 = vmatpush2.msra.mxu0 0.0
    %727 = vmatprep.subr.mxu0 0.0
    %728 = vmatpush2.msra.mxu0 0.0
    %729 = vmatprep.subr.mxu0 0.0
    %730 = vmatpush2.msra.mxu0 0.0
    %731 = vmatprep.subr.mxu0 0.0
    %732 = vmatpush2.msra.mxu0 0.0
    %733 = vmatprep.subr.mxu0 0.0
    %734 = vmatpush2.msra.mxu0 0.0
    %735 = vmatprep.subr.mxu0 0.0
    %736 = vmatpush2.msra.mxu0 0.0
    %737 = vmatprep.subr.mxu0 0.0
    %738 = vmatpush2.msra.mxu0 0.0
    %739 = vmatprep.subr.mxu0 0.0
    %740 = vmatpush2.msra.mxu0 0.0
    %741 = vmatprep.subr.mxu0 0.0
    %742 = vmatpush2.msra.mxu0 0.0
    %743 = vmatprep.subr.mxu0 0.0
    %744 = vmatpush2.msra.mxu0 0.0
    %745 = vmatprep.subr.mxu0 0.0
    %746 = vmatpush2.msra.mxu0 0.0
    %747 = vmatprep.subr.mxu0 0.0
    %748 = vmatpush2.msra.mxu0 0.0
    %749 = vmatprep.mubr.f32.mxu0 0.0
    %750 = vmatmul.mubr.f32.gmra.mxu0 %v683
    %v751 = vpop.f32.mrf.mxu0
    %v752 = vadd.f32 %v680, %v751
    %v753 = vpop.f32.mrf.mxu0
    %754 = vdwg.mxu0
    %v755 = vtanh.pop %v752
    %v756 = vmul.f32 %v664, %v755
    %757 = vst [vmem:[%s10] sm:$0xff] %v756
    // Predicated region
    $region61: #{forward.1} parent=1 // pred_check
      _
    $region62: #{forward.1} parent=1 // pred_check_branch
      %759 = sbr.rel (0) target = $region64
    $region63: #{forward.1} parent=1 // pred_region
      _
    $region64: #{forward.1} parent=1 // pred_fallthru
      _
    // Predicated region
    $region65: #{forward.1} parent=1 // pred_check
      _
    $region66: #{forward.1} parent=1 // pred_check_branch
      %761 = sbr.rel (0) target = $region68
    $region67: #{forward.1} parent=1 // pred_region
      _
    $region68: #{forward.1} parent=1 // pred_fallthru
      _
    %762 = vsyncpa [#allocation6], 1
    %763 = vsyncpa [#allocation8], 1

</llo_original>
